<compile_context>
chip_gen: v5e
topology: v5e:2x2
jax: 0.10.0
libtpu: 0.0.40
codegen_flags: <defaults>
</compile_context>

<pallas_src>
import jax
import jax.numpy as jnp
from jax.experimental import pallas as pl
from jax.experimental.pallas import tpu as pltpu


def bottleneck_kernel(x_ref, w1_ref, b1_ref, w2_ref, b2_ref, w3_ref, b3_ref,
                      o_ref, pad_ref):
    """Processes F frames, keeping everything in the lane-dense (rows, W*C) layout."""
    F, H, WCin = x_ref.shape
    WCmid = w1_ref.shape[1]          # W * width
    WCout = w3_ref.shape[1]          # W * Cout
    rows = F * H

    # Lane-dense input view; this reshape only merges leading dims (no lane relayout).
    x = x_ref[...].reshape(rows, WCin)

    # conv1 (1x1x1) + folded bn1 + relu: one bf16 matmul with K = W*Cin.
    h1 = jnp.dot(x.astype(jnp.bfloat16), w1_ref[...],
                 preferred_element_type=jnp.float32)
    h1 = jnp.maximum(h1 + b1_ref[...], 0.0)

    # conv2 (1x3x3, stride 1, pad 1) + folded bn2 + relu.
    # Vertical (H) zero pad lives in a small bf16 VMEM scratch; the horizontal (W) shift
    # + boundary zeros are folded into the banded block weights w2_ref[kh].  The 3x3
    # conv is therefore 3 accumulating lane-dense matmuls: no im2col slab, no lane-axis
    # concatenation, no per-step full-scratch zero fill (only the 2 border rows).
    zrow = jnp.zeros((F, 1, WCmid), jnp.bfloat16)
    pad_ref[:, 0:1, :] = zrow
    pad_ref[:, H + 1:H + 2, :] = zrow
    pad_ref[:, 1:H + 1, :] = h1.reshape(F, H, WCmid).astype(jnp.bfloat16)
    acc = jnp.zeros((rows, WCmid), jnp.float32)
    for kh in range(3):   # static unroll; f32 accumulation (MRB-accumulated on v7x,
                          # cheap VPU adds on v5e/v6e where the kernel is not VALU-bound)
        tap = pad_ref[:, kh:kh + H, :].reshape(rows, WCmid)
        acc = acc + jnp.dot(tap, w2_ref[kh], preferred_element_type=jnp.float32)
    h2 = jnp.maximum(acc + b2_ref[...], 0.0)

    # conv3 (1x1x1) + folded bn3, identity residual (down_sample=None), relu.
    h3 = jnp.dot(h2.astype(jnp.bfloat16), w3_ref[...],
                 preferred_element_type=jnp.float32)
    h3 = h3 + b3_ref[...]
    o_ref[...] = jnp.maximum(h3 + x, 0.0).reshape(F, H, WCout)


def resnet3d_bottleneck_frames(xf, w1, s1, b1, w2, s2, b2, w3, s3, b3,
                               frames_per_block=None):
    """Channels-last entry point.

    xf: (NT, H, W, Cin) float32 frames.  Returns (NT, H, W, Cout) float32.
    Production callers should keep activations in this layout across layers so no
    NCDHW<->NDHWC transposes (full-tensor HBM round trips) surround the kernel.
    """
    NT, H, W, Cin = xf.shape
    width = w1.shape[1]
    Cout = w3.shape[1]
    assert Cin == Cout, "identity residual (down_sample=None) requires Cin == Cout"

    # ---------- host-side prep (free relative to the kernel) ----------
    # Fold eval-mode BN scales into the conv weights; only biases enter the kernel.
    w1f = w1 * s1.reshape(1, width)
    w2f = w2 * s2.reshape(1, 1, 1, width)           # (kh, kw, cin, cout)
    w3f = w3 * s3.reshape(1, Cout)

    # Lane-dense "banded block" weights so the kernel works on (rows, W*C) slabs:
    #   conv1/conv3: block-diagonal kron(I_W, w)            -> (W*Cin, W*width) etc.
    #   conv2      : per-kh banded matrix folding the kw shift and the W-boundary zeros.
    eye_w = jnp.eye(W, dtype=jnp.float32)
    w1b = jnp.kron(eye_w, w1f).astype(jnp.bfloat16)                      # (W*Cin,  W*width)
    w2b = jnp.stack([
        sum(jnp.kron(jnp.eye(W, W, k=1 - kw, dtype=jnp.float32), w2f[kh, kw])
            for kw in range(3))
        for kh in range(3)]).astype(jnp.bfloat16)                        # (3, W*width, W*width)
    w3b = jnp.kron(eye_w, w3f).astype(jnp.bfloat16)                      # (W*width, W*Cout)
    b1b = jnp.tile(b1.reshape(-1), W).reshape(1, W * width).astype(jnp.float32)
    b2b = jnp.tile(b2.reshape(-1), W).reshape(1, W * width).astype(jnp.float32)
    b3b = jnp.tile(b3.reshape(-1), W).reshape(1, W * Cout).astype(jnp.float32)

    # Lane-dense streamed layout (contiguous merge of the last two dims: no data movement).
    x2 = xf.reshape(NT, H, W * Cin)

    # ---------- frames per grid step: VMEM budget + >= ~8 pipeline steps ----------
    if frames_per_block is None:
        lanes = lambda c: max(W * c, 128)
        per_frame = (4 * H * (lanes(Cin) + lanes(Cout)) * 2   # in/out blocks (double-buffered)
                     + 2 * (H + 2) * lanes(width)             # bf16 pad scratch
                     + 4 * H * lanes(width) * 8)              # h1/h2/acc/tap temporaries (est.)
        budget = 12 * 1024 * 1024    # fits v5e's 16 MiB default scoped VMEM; << v6e/v7x limits
        f_vmem = max(1, budget // per_frame)
        f_rows = max(1, 4096 // (H * W))   # >=~512-row blocks already sit at the HBM roofline
        f_grid = max(1, NT // 8)           # >= ~8 grid steps so DMA pipelines (>=4 per v7x core)
        frames_per_block = int(max(1, min(f_vmem, f_rows, f_grid)))
        while NT % frames_per_block:
            frames_per_block -= 1
    F = frames_per_block
    assert NT % F == 0, (NT, F)

    def full(shape):
        return pl.BlockSpec(shape, lambda i: (0,) * len(shape))

    grid_spec = pltpu.PrefetchScalarGridSpec(
        num_scalar_prefetch=0,
        grid=(NT // F,),
        in_specs=[
            # TODO(synk): if the input DMA is still exposed at tiny per-step compute,
            # deepen prefetch here with pipeline_mode=pl.Buffered(3).
            pl.BlockSpec((F, H, W * Cin), lambda i: (i, 0, 0)),
            full(w1b.shape), full(b1b.shape),
            full(w2b.shape), full(b2b.shape),
            full(w3b.shape), full(b3b.shape),
        ],
        out_specs=pl.BlockSpec((F, H, W * Cout), lambda i: (i, 0, 0)),
        scratch_shapes=[pltpu.VMEM((F, H + 2, W * width), jnp.bfloat16)],
    )
    out2 = pl.pallas_call(
        bottleneck_kernel,
        out_shape=jax.ShapeDtypeStruct((NT, H, W * Cout), jnp.float32),
        grid_spec=grid_spec,
        compiler_params=pltpu.CompilerParams(
            dimension_semantics=("parallel",)),
    )(x2, w1b, b1b, w2b, b2b, w3b, b3b)
    return out2.reshape(NT, H, W, Cout)


def resnet3d_bottleneck(x, w1, s1, b1, w2, s2, b2, w3, s3, b3, frames_per_block=None):
    """NCDHW adapter matching the PyTorch module interface: x (N, C, T, H, W).
    The two transposes below are interface-only; for production keep activations
    channels-last across layers and call resnet3d_bottleneck_frames directly."""
    N, Cin, T, H, W = x.shape
    Cout = w3.shape[1]
    xf = jnp.transpose(x, (0, 2, 3, 4, 1)).reshape(N * T, H, W, Cin)
    out = resnet3d_bottleneck_frames(xf, w1, s1, b1, w2, s2, b2, w3, s3, b3,
                                     frames_per_block=frames_per_block)
    return jnp.transpose(out.reshape(N, T, H, W, Cout), (0, 4, 1, 2, 3))


def reference_frames(xf, w1f, b1, w2f, b2, w3f, b3, dot_dtype=jnp.float32):
    """Unfused per-channel reference in (NT, H, W, C) layout.  `dot_dtype` sets the
    matmul operand precision (float32 = exact module math, bfloat16 = kernel-matched);
    accumulation, residual add and ReLU are always f32."""
    NT, H, W, Cin = xf.shape
    f32 = jnp.float32
    c = lambda a: a.astype(dot_dtype)
    h1 = jnp.maximum(
        jnp.einsum('nhwc,cd->nhwd', c(xf), c(w1f), preferred_element_type=f32) + b1, 0.0)
    hp = jnp.pad(h1, ((0, 0), (1, 1), (1, 1), (0, 0)))
    acc = 0.0
    for kh in range(3):
        for kw in range(3):
            acc = acc + jnp.einsum('nhwc,cd->nhwd', c(hp[:, kh:kh + H, kw:kw + W, :]),
                                   c(w2f[kh, kw]), preferred_element_type=f32)
    h2 = jnp.maximum(acc + b2, 0.0)
    h3 = jnp.einsum('nhwc,cd->nhwd', c(h2), c(w3f), preferred_element_type=f32) + b3
    return jnp.maximum(h3 + xf, 0.0)


def fold_bn(gamma, beta, mean, var, eps=1e-5):
    scale = gamma / jnp.sqrt(var + eps)
    bias = beta - mean * scale
    return scale, bias


if __name__ == "__main__":
    # Module config: out_planes=8, expansion=4 -> in_planes=32, width=8, Cout=32,
    # spatial_stride=1, temporal_stride=1, inflate=False, down_sample=None.
    N, T, H, W = 2, 4, 8, 8
    out_planes = 8
    in_planes = out_planes * 4          # identity residual requires Cin == Cout
    width = out_planes                  # base_width=64, groups=1
    Cout = out_planes * 4

    key = jax.random.PRNGKey(0)
    ks = jax.random.split(key, 8)

    x = jax.random.normal(ks[0], (N, in_planes, T, H, W), jnp.float32)

    # Conv weights (bias=False), stored pre-transposed: conv1 (Cin, width),
    # conv2 (kh, kw, cin, cout), conv3 (width, Cout).
    w1 = 0.1 * jax.random.normal(ks[1], (in_planes, width), jnp.float32)
    w2 = 0.1 * jax.random.normal(ks[2], (3, 3, width, width), jnp.float32)
    w3 = 0.1 * jax.random.normal(ks[3], (width, Cout), jnp.float32)

    # BatchNorm3d params (eval mode), deterministic.
    def bn_params(k, c):
        k1, k2, k3, k4 = jax.random.split(k, 4)
        gamma = 1.0 + 0.1 * jax.random.normal(k1, (c,), jnp.float32)
        beta = 0.1 * jax.random.normal(k2, (c,), jnp.float32)
        mean = 0.1 * jax.random.normal(k3, (c,), jnp.float32)
        var = jax.random.uniform(k4, (c,), jnp.float32, 0.5, 1.5)
        return fold_bn(gamma, beta, mean, var)

    s1, b1 = bn_params(ks[4], width)
    s2, b2 = bn_params(ks[5], width)
    s3, b3 = bn_params(ks[6], Cout)

    out = resnet3d_bottleneck(x, w1, s1, b1, w2, s2, b2, w3, s3, b3)
    out = jax.block_until_ready(out)
    assert out.shape == (N, Cout, T, H, W), out.shape

    # References in the channels-last frame layout.
    xf = jnp.transpose(x, (0, 2, 3, 4, 1)).reshape(N * T, H, W, in_planes)
    outf = jnp.transpose(out, (0, 2, 3, 4, 1)).reshape(N * T, H, W, Cout)
    w1f = w1 * s1[None, :]
    w2f = w2 * s2[None, None, None, :]
    w3f = w3 * s3[None, :]

    # Strict check against the kernel-matched math (bf16 matmul operands, f32 accum):
    # validates the banded-block weight construction and the fused dataflow.
    ref_bf16 = reference_frames(xf, w1f, b1, w2f, b2, w3f, b3, dot_dtype=jnp.bfloat16)
    assert jnp.allclose(outf, ref_bf16, atol=1e-2, rtol=1e-2), \
        float(jnp.max(jnp.abs(outf - ref_bf16)))

    # Looser check against the exact f32 module math (bf16 operands cost ~1e-2 rel error;
    # accumulation, residual and ReLU stay f32, bounding the deviation).
    ref_f32 = reference_frames(xf, w1f, b1, w2f, b2, w3f, b3, dot_dtype=jnp.float32)
    assert jnp.allclose(outf, ref_f32, atol=5e-2, rtol=5e-2), \
        float(jnp.max(jnp.abs(outf - ref_f32)))

    print("KERNEL_OK")
</pallas_src>

<mosaic_0001>
module attributes {stable_mosaic.version = 11 : i64} {
  func.func @bottleneck_kernel(%arg0: i32, %arg1: memref<1x8x256xf32, #tpu.memory_space<vmem>>, %arg2: memref<256x64xbf16, #tpu.memory_space<vmem>>, %arg3: memref<1x64xf32, #tpu.memory_space<vmem>>, %arg4: memref<3x64x64xbf16, #tpu.memory_space<vmem>>, %arg5: memref<1x64xf32, #tpu.memory_space<vmem>>, %arg6: memref<64x256xbf16, #tpu.memory_space<vmem>>, %arg7: memref<1x256xf32, #tpu.memory_space<vmem>>, %arg8: memref<1x8x256xf32, #tpu.memory_space<vmem>>, %arg9: memref<1x10x64xbf16, #tpu.memory_space<vmem>>) attributes {dimension_semantics = [#tpu.dimension_semantics<parallel>], iteration_bounds = array<i64: 8>, scalar_prefetch = 0 : i64, scratch_operands = 1 : i64, tpu.core_type = #tpu.core_type<tc>, window_params = [{transform_indices = @transform_0, window_bounds = array<i64: 1, 8, 256>}, {pipeline_mode = #tpu.pipeline_mode<synchronous>, transform_indices = @transform_1, window_bounds = array<i64: 256, 64>}, {pipeline_mode = #tpu.pipeline_mode<synchronous>, transform_indices = @transform_2, window_bounds = array<i64: 1, 64>}, {pipeline_mode = #tpu.pipeline_mode<synchronous>, transform_indices = @transform_3, window_bounds = array<i64: 3, 64, 64>}, {pipeline_mode = #tpu.pipeline_mode<synchronous>, transform_indices = @transform_4, window_bounds = array<i64: 1, 64>}, {pipeline_mode = #tpu.pipeline_mode<synchronous>, transform_indices = @transform_5, window_bounds = array<i64: 64, 256>}, {pipeline_mode = #tpu.pipeline_mode<synchronous>, transform_indices = @transform_6, window_bounds = array<i64: 1, 256>}, {transform_indices = @transform_7, window_bounds = array<i64: 1, 8, 256>}]} {
    %c0 = arith.constant 0 : index
    %c0_0 = arith.constant 0 : index
    %c0_1 = arith.constant 0 : index
    %0 = vector.load %arg1[%c0, %c0_0, %c0_1] : memref<1x8x256xf32, #tpu.memory_space<vmem>>, vector<1x8x256xf32>
    %1 = vector.shape_cast %0 : vector<1x8x256xf32> to vector<8x256xf32>
    %2 = arith.truncf %1 : vector<8x256xf32> to vector<8x256xbf16>
    %c0_2 = arith.constant 0 : index
    %c0_3 = arith.constant 0 : index
    %3 = vector.load %arg2[%c0_2, %c0_3] : memref<256x64xbf16, #tpu.memory_space<vmem>>, vector<256x64xbf16>
    %cst = arith.constant dense<0.000000e+00> : vector<8x64xf32>
    %4 = tpu.matmul %2, %3, %cst {dimension_numbers = #tpu.dot_dimension_numbers<[1], [0], [0], [1], [0, 0, 1, 1], [], []>} : vector<8x256xbf16>, vector<256x64xbf16>, vector<8x64xf32> -> vector<8x64xf32>
    %c0_4 = arith.constant 0 : index
    %c0_5 = arith.constant 0 : index
    %5 = vector.load %arg3[%c0_4, %c0_5] : memref<1x64xf32, #tpu.memory_space<vmem>>, vector<1x64xf32>
    %6 = vector.broadcast %5 : vector<1x64xf32> to vector<8x64xf32>
    %7 = arith.addf %4, %6 : vector<8x64xf32>
    %cst_6 = arith.constant 0.000000e+00 : f32
    %8 = vector.broadcast %cst_6 : f32 to vector<8x64xf32>
    %9 = arith.maximumf %7, %8 : vector<8x64xf32>
    %cst_7 = arith.constant 0.000000e+00 : bf16
    %10 = vector.broadcast %cst_7 : bf16 to vector<1x1x64xbf16>
    %c0_8 = arith.constant 0 : index
    %c0_9 = arith.constant 0 : index
    %c0_10 = arith.constant 0 : index
    %11 = vector.load %arg9[%c0_8, %c0_9, %c0_10] : memref<1x10x64xbf16, #tpu.memory_space<vmem>>, vector<1x1x64xbf16>
    tpu.vector_store %arg9[%c0_8, %c0_9, %c0_10], %10 {strides = array<i32>} : memref<1x10x64xbf16, #tpu.memory_space<vmem>>, vector<1x1x64xbf16>,
    %c0_11 = arith.constant 0 : index
    %c9 = arith.constant 9 : index
    %c0_12 = arith.constant 0 : index
    %12 = vector.load %arg9[%c0_11, %c9, %c0_12] : memref<1x10x64xbf16, #tpu.memory_space<vmem>>, vector<1x1x64xbf16>
    tpu.vector_store %arg9[%c0_11, %c9, %c0_12], %10 {strides = array<i32>} : memref<1x10x64xbf16, #tpu.memory_space<vmem>>, vector<1x1x64xbf16>,
    %13 = vector.shape_cast %9 : vector<8x64xf32> to vector<1x8x64xf32>
    %14 = arith.truncf %13 : vector<1x8x64xf32> to vector<1x8x64xbf16>
    %c0_13 = arith.constant 0 : index
    %c1 = arith.constant 1 : index
    %c0_14 = arith.constant 0 : index
    %15 = vector.load %arg9[%c0_13, %c1, %c0_14] : memref<1x10x64xbf16, #tpu.memory_space<vmem>>, vector<1x8x64xbf16>
    tpu.vector_store %arg9[%c0_13, %c1, %c0_14], %14 {strides = array<i32>} : memref<1x10x64xbf16, #tpu.memory_space<vmem>>, vector<1x8x64xbf16>,
    %cst_15 = arith.constant 0.000000e+00 : f32
    %16 = vector.broadcast %cst_15 : f32 to vector<8x64xf32>
    %c0_16 = arith.constant 0 : index
    %c0_17 = arith.constant 0 : index
    %c0_18 = arith.constant 0 : index
    %17 = vector.load %arg9[%c0_16, %c0_17, %c0_18] : memref<1x10x64xbf16, #tpu.memory_space<vmem>>, vector<1x8x64xbf16>
    %18 = vector.shape_cast %17 : vector<1x8x64xbf16> to vector<8x64xbf16>
    %c0_19 = arith.constant 0 : index
    %c0_20 = arith.constant 0 : index
    %c0_21 = arith.constant 0 : index
    %19 = vector.load %arg4[%c0_19, %c0_20, %c0_21] : memref<3x64x64xbf16, #tpu.memory_space<vmem>>, vector<1x64x64xbf16>
    %20 = vector.shape_cast %19 : vector<1x64x64xbf16> to vector<64x64xbf16>
    %cst_22 = arith.constant dense<0.000000e+00> : vector<8x64xf32>
    %21 = tpu.matmul %18, %20, %cst_22 {dimension_numbers = #tpu.dot_dimension_numbers<[1], [0], [0], [1], [0, 0, 1, 1], [], []>} : vector<8x64xbf16>, vector<64x64xbf16>, vector<8x64xf32> -> vector<8x64xf32>
    %22 = arith.addf %16, %21 : vector<8x64xf32>
    %c0_23 = arith.constant 0 : index
    %c1_24 = arith.constant 1 : index
    %c0_25 = arith.constant 0 : index
    %23 = vector.load %arg9[%c0_23, %c1_24, %c0_25] : memref<1x10x64xbf16, #tpu.memory_space<vmem>>, vector<1x8x64xbf16>
    %24 = vector.shape_cast %23 : vector<1x8x64xbf16> to vector<8x64xbf16>
    %c1_26 = arith.constant 1 : index
    %c0_27 = arith.constant 0 : index
    %c0_28 = arith.constant 0 : index
    %25 = vector.load %arg4[%c1_26, %c0_27, %c0_28] : memref<3x64x64xbf16, #tpu.memory_space<vmem>>, vector<1x64x64xbf16>
    %26 = vector.shape_cast %25 : vector<1x64x64xbf16> to vector<64x64xbf16>
    %cst_29 = arith.constant dense<0.000000e+00> : vector<8x64xf32>
    %27 = tpu.matmul %24, %26, %cst_29 {dimension_numbers = #tpu.dot_dimension_numbers<[1], [0], [0], [1], [0, 0, 1, 1], [], []>} : vector<8x64xbf16>, vector<64x64xbf16>, vector<8x64xf32> -> vector<8x64xf32>
    %28 = arith.addf %22, %27 : vector<8x64xf32>
    %c0_30 = arith.constant 0 : index
    %c2 = arith.constant 2 : index
    %c0_31 = arith.constant 0 : index
    %29 = vector.load %arg9[%c0_30, %c2, %c0_31] : memref<1x10x64xbf16, #tpu.memory_space<vmem>>, vector<1x8x64xbf16>
    %30 = vector.shape_cast %29 : vector<1x8x64xbf16> to vector<8x64xbf16>
    %c2_32 = arith.constant 2 : index
    %c0_33 = arith.constant 0 : index
    %c0_34 = arith.constant 0 : index
    %31 = vector.load %arg4[%c2_32, %c0_33, %c0_34] : memref<3x64x64xbf16, #tpu.memory_space<vmem>>, vector<1x64x64xbf16>
    %32 = vector.shape_cast %31 : vector<1x64x64xbf16> to vector<64x64xbf16>
    %cst_35 = arith.constant dense<0.000000e+00> : vector<8x64xf32>
    %33 = tpu.matmul %30, %32, %cst_35 {dimension_numbers = #tpu.dot_dimension_numbers<[1], [0], [0], [1], [0, 0, 1, 1], [], []>} : vector<8x64xbf16>, vector<64x64xbf16>, vector<8x64xf32> -> vector<8x64xf32>
    %34 = arith.addf %28, %33 : vector<8x64xf32>
    %c0_36 = arith.constant 0 : index
    %c0_37 = arith.constant 0 : index
    %35 = vector.load %arg5[%c0_36, %c0_37] : memref<1x64xf32, #tpu.memory_space<vmem>>, vector<1x64xf32>
    %36 = vector.broadcast %35 : vector<1x64xf32> to vector<8x64xf32>
    %37 = arith.addf %34, %36 : vector<8x64xf32>
    %cst_38 = arith.constant 0.000000e+00 : f32
    %38 = vector.broadcast %cst_38 : f32 to vector<8x64xf32>
    %39 = arith.maximumf %37, %38 : vector<8x64xf32>
    %40 = arith.truncf %39 : vector<8x64xf32> to vector<8x64xbf16>
    %c0_39 = arith.constant 0 : index
    %c0_40 = arith.constant 0 : index
    %41 = vector.load %arg6[%c0_39, %c0_40] : memref<64x256xbf16, #tpu.memory_space<vmem>>, vector<64x256xbf16>
    %cst_41 = arith.constant dense<0.000000e+00> : vector<8x256xf32>
    %42 = tpu.matmul %40, %41, %cst_41 {dimension_numbers = #tpu.dot_dimension_numbers<[1], [0], [0], [1], [0, 0, 1, 1], [], []>} : vector<8x64xbf16>, vector<64x256xbf16>, vector<8x256xf32> -> vector<8x256xf32>
    %c0_42 = arith.constant 0 : index
    %c0_43 = arith.constant 0 : index
    %43 = vector.load %arg7[%c0_42, %c0_43] : memref<1x256xf32, #tpu.memory_space<vmem>>, vector<1x256xf32>
    %44 = vector.broadcast %43 : vector<1x256xf32> to vector<8x256xf32>
    %45 = arith.addf %42, %44 : vector<8x256xf32>
    %46 = arith.addf %45, %1 : vector<8x256xf32>
    %cst_44 = arith.constant 0.000000e+00 : f32
    %47 = vector.broadcast %cst_44 : f32 to vector<8x256xf32>
    %48 = arith.maximumf %46, %47 : vector<8x256xf32>
    %49 = vector.shape_cast %48 : vector<8x256xf32> to vector<1x8x256xf32>
    %c0_45 = arith.constant 0 : index
    %c0_46 = arith.constant 0 : index
    %c0_47 = arith.constant 0 : index
    %50 = vector.load %arg8[%c0_45, %c0_46, %c0_47] : memref<1x8x256xf32, #tpu.memory_space<vmem>>, vector<1x8x256xf32>
    tpu.vector_store %arg8[%c0_45, %c0_46, %c0_47], %49 {strides = array<i32>} : memref<1x8x256xf32, #tpu.memory_space<vmem>>, vector<1x8x256xf32>,
    return
  }
  func.func @transform_0(%arg0: i32) -> (i32, i32, i32) {
    %c0_i32 = arith.constant 0 : i32
    %c0_i32_0 = arith.constant 0 : i32
    %c0_i32_1 = arith.constant 0 : i32
    return %arg0, %c0_i32, %c0_i32_0 : i32, i32, i32
  }
  func.func @transform_1(%arg0: i32) -> (i32, i32) {
    %c0_i32 = arith.constant 0 : i32
    %c0_i32_0 = arith.constant 0 : i32
    %c0_i32_1 = arith.constant 0 : i32
    return %c0_i32, %c0_i32_0 : i32, i32
  }
  func.func @transform_2(%arg0: i32) -> (i32, i32) {
    %c0_i32 = arith.constant 0 : i32
    %c0_i32_0 = arith.constant 0 : i32
    %c0_i32_1 = arith.constant 0 : i32
    return %c0_i32, %c0_i32_0 : i32, i32
  }
  func.func @transform_3(%arg0: i32) -> (i32, i32, i32) {
    %c0_i32 = arith.constant 0 : i32
    %c0_i32_0 = arith.constant 0 : i32
    %c0_i32_1 = arith.constant 0 : i32
    %c0_i32_2 = arith.constant 0 : i32
    return %c0_i32, %c0_i32_0, %c0_i32_1 : i32, i32, i32
  }
  func.func @transform_4(%arg0: i32) -> (i32, i32) {
    %c0_i32 = arith.constant 0 : i32
    %c0_i32_0 = arith.constant 0 : i32
    %c0_i32_1 = arith.constant 0 : i32
    return %c0_i32, %c0_i32_0 : i32, i32
  }
  func.func @transform_5(%arg0: i32) -> (i32, i32) {
    %c0_i32 = arith.constant 0 : i32
    %c0_i32_0 = arith.constant 0 : i32
    %c0_i32_1 = arith.constant 0 : i32
    return %c0_i32, %c0_i32_0 : i32, i32
  }
  func.func @transform_6(%arg0: i32) -> (i32, i32) {
    %c0_i32 = arith.constant 0 : i32
    %c0_i32_0 = arith.constant 0 : i32
    %c0_i32_1 = arith.constant 0 : i32
    return %c0_i32, %c0_i32_0 : i32, i32
  }
  func.func @transform_7(%arg0: i32) -> (i32, i32, i32) {
    %c0_i32 = arith.constant 0 : i32
    %c0_i32_0 = arith.constant 0 : i32
    %c0_i32_1 = arith.constant 0 : i32
    return %arg0, %c0_i32, %c0_i32_0 : i32, i32, i32
  }
}

</mosaic_0001>

<llo_original>
// kernel: tpu_custom_call.1
$region0: #{tpu_custom_call.1}
  #allocation0 [shape = 'u32[]', space=smem, size = 0x4, offset = 0x4, fixed_abs, tag = 'smem constant byte address 0x4 - core index']
  #allocation1 [shape = 'u32[72,128]{1,0:T(1,128)}', space=vmem, size = 0x9000, scoped, tag = 'internal scratch']
  #allocation2 [shape = 'bf16[1,10,64]{2,1,0:T(8,128)(2,1)}', space=vmem, size = 0x1000, scoped, tag = 'scratch operand']
  %s0 = inlined_call_operand.vmem [shape: f32[8,8,256], index: 0, kind: input, shape index: {}]
  %s1 = inlined_call_operand.vmem [shape: bf16[256,64], index: 1, kind: input, shape index: {}]
  %s2 = inlined_call_operand.hbm [shape: f32[1,64], index: 2, kind: input, shape index: {}]
  %s3 = inlined_call_operand.hbm [shape: bf16[3,64,64], index: 3, kind: input, shape index: {}]
  %s4 = inlined_call_operand.hbm [shape: f32[1,64], index: 4, kind: input, shape index: {}]
  %s5 = inlined_call_operand.vmem [shape: bf16[64,256], index: 5, kind: input, shape index: {}]
  %s6 = inlined_call_operand.vmem [shape: f32[1,256], index: 6, kind: input, shape index: {}]
  %s7 = inlined_call_operand.hbm [shape: f32[8,8,256], index: 7, kind: output, shape index: {}]
  %s8 = sld [smem:[#allocation0]]
  $region73: #{tpu_custom_call.1} parent=0
    _
  %s10 = ssub.s32 1, %s8
  %s11 = scalar_select 0, %s10, %s8
  $region1: #{tpu_custom_call.1} parent=0
    #allocation3 [shape = 'u8[512]{0}', space=vmem, size = 0x400, scoped, tag = 'input window, operand 2, single buffered']
    #allocation4 [shape = 's32[2]{0}', space=sflag, size = 0x8, scoped, tag = 'scoped memory for tpu_custom_call.1']
    #allocation5 [shape = 's32[2]{0}', space=sflag, size = 0x8, scoped, tag = 'scoped memory for tpu_custom_call.1']
    #allocation6 [shape = 'u8[49152]{0}', space=vmem, size = 0xc000, scoped, tag = 'input window, operand 3, single buffered']
    #allocation7 [shape = 's32[1]{0}', space=sflag, size = 0x4, scoped, tag = 'scoped memory for tpu_custom_call.1']
    #allocation8 [shape = 'u8[512]{0}', space=vmem, size = 0x400, scoped, tag = 'input window, operand 4, single buffered']
    #allocation9 [shape = 'u8[16384]{0}', space=vmem, size = 0x4000, scoped, tag = 'output window, operand 0']
    %12 = vsyncpa [#allocation4], 0
    %13 = vsyncpa [#allocation7], 0
    %14 = vsyncpa [#allocation5], 0
    %s15 = scalar_lea.sflag [#allocation5], 1
    %16 = vsyncpa %s15, 0
    loop: start=0, step=1, limit=10
    $region2: #{tpu_custom_call.1} parent=1 // loop_pre_header
      _
    $region3: #{tpu_custom_call.1} parent=1 // loop_header
      %s18 = sphi 0, %s22
      %p19 = scmp.ge.s32.totalorder %s18, 10
      %s28 = sphi 0, %s30
      %s31 = sphi 0, %s28
      %s32 = sphi 0, %s31
      %s48 = sphi 0, %s32
      %s52 = sphi 0, %s52
      %s54 = sphi 0, %s52
      %s55 = sphi 0, %s54
      %s69 = sphi 0, %s55
      %s73 = sphi 0, %s73
      %s75 = sphi 0, %s73
      %s76 = sphi 0, %s75
      %s90 = sphi 0, %s76
      %s94 = sphi 0, %s94
      %s96 = sphi 0, %s94
      %s97 = sphi 0, %s96
      %s111 = sphi 0, %s97
      %s115 = sphi 0, %s115
      %s117 = sphi 0, %s115
      %s118 = sphi 0, %s117
      %s132 = sphi 0, %s118
      %s136 = sphi 0, %s136
      %s138 = sphi 0, %s136
      %s139 = sphi 0, %s138
      %s153 = sphi 0, %s139
      %s157 = sphi 0, %s157
      %s159 = sphi 0, %s157
      %s160 = sphi 0, %s159
      %s174 = sphi 0, %s160
      %s180 = sphi 0, %s182
      %s183 = sphi 0, %s180
      %s184 = sphi 0, %s183
      %s200 = sphi 0, %s184
    $region4: #{tpu_custom_call.1} parent=1 // loop_header_branch
      %21 = sbr.rel (%p19) target = $region8
    $region5: #{tpu_custom_call.1} parent=1 // loop_body
      %s23 = ssub.s32 %s18, 1
      %s24 = ssub.s32 %s18, 2
      %s25 = sadd.s32 %s18, 1
      %s26 = ssub.s32 %s18, %s25
      %p27 = scmp.eq.s32.totalorder %s26, 0
      %s29 = sadd.s32 %s28, 1
      %s30 = scalar_select %p27, %s28, %s29
      %p33 = pneg %p27
      %p34 = scmp.eq.s32.totalorder %s18, 7
      %p35 = por %p33, %p34
      %p36 = scmp.ne.s32.totalorder %s28, %s31
      %p37 = scmp.eq.s32.totalorder %s18, 0
      %p38 = por %p36, %p37
      %p39 = scmp.ne.s32.totalorder %s28, %s31
      %p40 = scmp.eq.s32.totalorder %s23, 7
      %p41 = por %p39, %p40
      %p42 = scmp.ne.s32.totalorder %s31, %s32
      %p43 = scmp.eq.s32.totalorder %s23, 0
      %p44 = por %p42, %p43
      %p45 = scmp.ne.s32.totalorder %s31, %s32
      %p46 = scmp.eq.s32.totalorder %s24, 7
      %p47 = por %p45, %p46
      %p49 = scmp.ne.s32.totalorder %s32, %s48
      %p50 = scmp.eq.s32.totalorder %s24, 0
      %p51 = por %p49, %p50
      %s53 = sadd.s32 %s52, 1
      %p56 = scmp.eq.s32.totalorder %s18, 7
      %p57 = scmp.ne.s32.totalorder %s52, %s54
      %p58 = scmp.eq.s32.totalorder %s18, 0
      %p59 = por %p57, %p58
      %p60 = scmp.ne.s32.totalorder %s52, %s54
      %p61 = scmp.eq.s32.totalorder %s23, 7
      %p62 = por %p60, %p61
      %p63 = scmp.ne.s32.totalorder %s54, %s55
      %p64 = scmp.eq.s32.totalorder %s23, 0
      %p65 = por %p63, %p64
      %p66 = scmp.ne.s32.totalorder %s54, %s55
      %p67 = scmp.eq.s32.totalorder %s24, 7
      %p68 = por %p66, %p67
      %p70 = scmp.ne.s32.totalorder %s55, %s69
      %p71 = scmp.eq.s32.totalorder %s24, 0
      %p72 = por %p70, %p71
      %s74 = sadd.s32 %s73, 1
      %p77 = scmp.eq.s32.totalorder %s18, 7
      %p78 = scmp.ne.s32.totalorder %s73, %s75
      %p79 = scmp.eq.s32.totalorder %s18, 0
      %p80 = por %p78, %p79
      %p81 = scmp.ne.s32.totalorder %s73, %s75
      %p82 = scmp.eq.s32.totalorder %s23, 7
      %p83 = por %p81, %p82
      %p84 = scmp.ne.s32.totalorder %s75, %s76
      %p85 = scmp.eq.s32.totalorder %s23, 0
      %p86 = por %p84, %p85
      %p87 = scmp.ne.s32.totalorder %s75, %s76
      %p88 = scmp.eq.s32.totalorder %s24, 7
      %p89 = por %p87, %p88
      %p91 = scmp.ne.s32.totalorder %s76, %s90
      %p92 = scmp.eq.s32.totalorder %s24, 0
      %p93 = por %p91, %p92
      %s95 = sadd.s32 %s94, 1
      %p98 = scmp.eq.s32.totalorder %s18, 7
      %p99 = scmp.ne.s32.totalorder %s94, %s96
      %p100 = scmp.eq.s32.totalorder %s18, 0
      %p101 = por %p99, %p100
      %p102 = scmp.ne.s32.totalorder %s94, %s96
      %p103 = scmp.eq.s32.totalorder %s23, 7
      %p104 = por %p102, %p103
      %p105 = scmp.ne.s32.totalorder %s96, %s97
      %p106 = scmp.eq.s32.totalorder %s23, 0
      %p107 = por %p105, %p106
      %p108 = scmp.ne.s32.totalorder %s96, %s97
      %p109 = scmp.eq.s32.totalorder %s24, 7
      %p110 = por %p108, %p109
      %p112 = scmp.ne.s32.totalorder %s97, %s111
      %p113 = scmp.eq.s32.totalorder %s24, 0
      %p114 = por %p112, %p113
      %s116 = sadd.s32 %s115, 1
      %p119 = scmp.eq.s32.totalorder %s18, 7
      %p120 = scmp.ne.s32.totalorder %s115, %s117
      %p121 = scmp.eq.s32.totalorder %s18, 0
      %p122 = por %p120, %p121
      %p123 = scmp.ne.s32.totalorder %s115, %s117
      %p124 = scmp.eq.s32.totalorder %s23, 7
      %p125 = por %p123, %p124
      %p126 = scmp.ne.s32.totalorder %s117, %s118
      %p127 = scmp.eq.s32.totalorder %s23, 0
      %p128 = por %p126, %p127
      %p129 = scmp.ne.s32.totalorder %s117, %s118
      %p130 = scmp.eq.s32.totalorder %s24, 7
      %p131 = por %p129, %p130
      %p133 = scmp.ne.s32.totalorder %s118, %s132
      %p134 = scmp.eq.s32.totalorder %s24, 0
      %p135 = por %p133, %p134
      %s137 = sadd.s32 %s136, 1
      %p140 = scmp.eq.s32.totalorder %s18, 7
      %p141 = scmp.ne.s32.totalorder %s136, %s138
      %p142 = scmp.eq.s32.totalorder %s18, 0
      %p143 = por %p141, %p142
      %p144 = scmp.ne.s32.totalorder %s136, %s138
      %p145 = scmp.eq.s32.totalorder %s23, 7
      %p146 = por %p144, %p145
      %p147 = scmp.ne.s32.totalorder %s138, %s139
      %p148 = scmp.eq.s32.totalorder %s23, 0
      %p149 = por %p147, %p148
      %p150 = scmp.ne.s32.totalorder %s138, %s139
      %p151 = scmp.eq.s32.totalorder %s24, 7
      %p152 = por %p150, %p151
      %p154 = scmp.ne.s32.totalorder %s139, %s153
      %p155 = scmp.eq.s32.totalorder %s24, 0
      %p156 = por %p154, %p155
      %s158 = sadd.s32 %s157, 1
      %p161 = scmp.eq.s32.totalorder %s18, 7
      %p162 = scmp.ne.s32.totalorder %s157, %s159
      %p163 = scmp.eq.s32.totalorder %s18, 0
      %p164 = por %p162, %p163
      %p165 = scmp.ne.s32.totalorder %s157, %s159
      %p166 = scmp.eq.s32.totalorder %s23, 7
      %p167 = por %p165, %p166
      %p168 = scmp.ne.s32.totalorder %s159, %s160
      %p169 = scmp.eq.s32.totalorder %s23, 0
      %p170 = por %p168, %p169
      %p171 = scmp.ne.s32.totalorder %s159, %s160
      %p172 = scmp.eq.s32.totalorder %s24, 7
      %p173 = por %p171, %p172
      %p175 = scmp.ne.s32.totalorder %s160, %s174
      %p176 = scmp.eq.s32.totalorder %s24, 0
      %p177 = por %p175, %p176
      %s178 = ssub.s32 %s18, %s25
      %p179 = scmp.eq.s32.totalorder %s178, 0
      %s181 = sadd.s32 %s180, 1
      %s182 = scalar_select %p179, %s180, %s181
      %p185 = pneg %p179
      %p186 = scmp.eq.s32.totalorder %s18, 7
      %p187 = por %p185, %p186
      %p188 = scmp.ne.s32.totalorder %s180, %s183
      %p189 = scmp.eq.s32.totalorder %s18, 0
      %p190 = por %p188, %p189
      %p191 = scmp.ne.s32.totalorder %s180, %s183
      %p192 = scmp.eq.s32.totalorder %s23, 7
      %p193 = por %p191, %p192
      %p194 = scmp.ne.s32.totalorder %s183, %s184
      %p195 = scmp.eq.s32.totalorder %s23, 0
      %p196 = por %p194, %p195
      %p197 = scmp.ne.s32.totalorder %s183, %s184
      %p198 = scmp.eq.s32.totalorder %s24, 7
      %p199 = por %p197, %p198
      %p201 = scmp.ne.s32.totalorder %s184, %s200
      %p202 = scmp.eq.s32.totalorder %s24, 0
      %p203 = por %p201, %p202
      %p204 = scmp.le.s32.totalorder 1, %s18
      %p205 = scmp.lt.s32.totalorder %s18, 9
      %p206 = pnand %p204, %p205
      %p207 = pneg %p206
      // Predicated region
      $region9: #{tpu_custom_call.1} parent=5 // pred_check
        _
      $region10: #{tpu_custom_call.1} parent=5 // pred_check_branch
        %209 = sbr.rel (%p206) target = $region12
      $region11: #{tpu_custom_call.1} parent=5 // pred_region
        %s210 = ssub.s32 %s18, 1
        // Predicated region
        $region13: #{tpu_custom_call.1} parent=11 // pred_check
          %p211 = pneg %p65
        $region14: #{tpu_custom_call.1} parent=11 // pred_check_branch
          %213 = sbr.rel (%p211) target = $region16
        $region15: #{tpu_custom_call.1} parent=11 // pred_region
          _
        $region16: #{tpu_custom_call.1} parent=11 // pred_fallthru
          _
        // Predicated region
        $region17: #{tpu_custom_call.1} parent=11 // pred_check
          %p214 = pneg %p86
        $region18: #{tpu_custom_call.1} parent=11 // pred_check_branch
          %216 = sbr.rel (%p214) target = $region20
        $region19: #{tpu_custom_call.1} parent=11 // pred_region
          %218 = vsyncadd [#allocation4], 0
          %s220 = sshll.u32 %s2, 4
          %s221 = int_to_ptr.hbm [resolvable:$true] %s220
          %s222 = sshll.u32 [#allocation3], 4
          %s223 = int_to_ptr.vmem [resolvable:$true] %s222
          %225 = dma.hbm_to_vmem [thread:$0]  %s221, 16, %s223, [#allocation4]
        $region20: #{tpu_custom_call.1} parent=11 // pred_fallthru
          _
        // Predicated region
        $region21: #{tpu_custom_call.1} parent=11 // pred_check
          %p226 = pneg %p107
        $region22: #{tpu_custom_call.1} parent=11 // pred_check_branch
          %228 = sbr.rel (%p226) target = $region24
        $region23: #{tpu_custom_call.1} parent=11 // pred_region
          %230 = vsyncadd [#allocation7], 0
          %s231 = sshll.u32 %s3, 4
          %s232 = int_to_ptr.hbm [resolvable:$true] %s231
          %s233 = sshll.u32 [#allocation6], 4
          %s234 = int_to_ptr.vmem [resolvable:$true] %s233
          %239 = dma.hbm_to_vmem [thread:$0]  %s232, 1536, %s234, [#allocation7], 64, 64, 4
        $region24: #{tpu_custom_call.1} parent=11 // pred_fallthru
          _
        // Predicated region
        $region25: #{tpu_custom_call.1} parent=11 // pred_check
          %p240 = pneg %p128
        $region26: #{tpu_custom_call.1} parent=11 // pred_check_branch
          %242 = sbr.rel (%p240) target = $region28
        $region27: #{tpu_custom_call.1} parent=11 // pred_region
          %244 = vsyncadd [#allocation7], 0
          %s246 = sshll.u32 %s4, 4
          %s247 = int_to_ptr.hbm [resolvable:$true] %s246
          %s248 = sshll.u32 [#allocation8], 4
          %s249 = int_to_ptr.vmem [resolvable:$true] %s248
          %251 = dma.hbm_to_vmem [thread:$0]  %s247, 16, %s249, [#allocation7]
        $region28: #{tpu_custom_call.1} parent=11 // pred_fallthru
          _
        // Predicated region
        $region29: #{tpu_custom_call.1} parent=11 // pred_check
          %p252 = pneg %p149
        $region30: #{tpu_custom_call.1} parent=11 // pred_check_branch
          %254 = sbr.rel (%p252) target = $region32
        $region31: #{tpu_custom_call.1} parent=11 // pred_region
          _
        $region32: #{tpu_custom_call.1} parent=11 // pred_fallthru
          _
        // Predicated region
        $region33: #{tpu_custom_call.1} parent=11 // pred_check
          %p255 = pneg %p170
        $region34: #{tpu_custom_call.1} parent=11 // pred_check_branch
          %257 = sbr.rel (%p255) target = $region36
        $region35: #{tpu_custom_call.1} parent=11 // pred_region
          _
        $region36: #{tpu_custom_call.1} parent=11 // pred_fallthru
          _
      $region12: #{tpu_custom_call.1} parent=5 // pred_fallthru
        _
      %p258 = scmp.lt.s32.totalorder %s18, 8
      // Predicated region
      $region37: #{tpu_custom_call.1} parent=5 // pred_check
        %p259 = pneg %p258
      $region38: #{tpu_custom_call.1} parent=5 // pred_check_branch
        %261 = sbr.rel (%p259) target = $region40
      $region39: #{tpu_custom_call.1} parent=5 // pred_region
        // Predicated region
        $region41: #{tpu_custom_call.1} parent=39 // pred_check
          %p262 = pneg %p38
        $region42: #{tpu_custom_call.1} parent=39 // pred_check_branch
          %264 = sbr.rel (%p262) target = $region44
        $region43: #{tpu_custom_call.1} parent=39 // pred_region
          %p265 = scmp.lt.s32.totalorder %s18, 7
          %s266 = scalar_select %p265, %s18, 7
          %s267 = smul.addr %s266, 2
          %s268 = smul.addr %s267, 8
          %s269 = scalar_lea.vmem %s0, %s268
        $region44: #{tpu_custom_call.1} parent=39 // pred_fallthru
          _
      $region40: #{tpu_custom_call.1} parent=5 // pred_fallthru
        _
      %p270 = scmp.le.s32.totalorder 1, %s18
      %p271 = scmp.lt.s32.totalorder %s18, 9
      %p272 = pnand %p270, %p271
      %p273 = pneg %p272
      // Predicated region
      $region45: #{tpu_custom_call.1} parent=5 // pred_check
        _
      $region46: #{tpu_custom_call.1} parent=5 // pred_check_branch
        %275 = sbr.rel (%p272) target = $region48
      $region47: #{tpu_custom_call.1} parent=5 // pred_region
        %s276 = ssub.s32 %s18, 1
        // Predicated region
        $region49: #{tpu_custom_call.1} parent=47 // pred_check
          %p277 = pneg %p86
        $region50: #{tpu_custom_call.1} parent=47 // pred_check_branch
          %279 = sbr.rel (%p277) target = $region52
        $region51: #{tpu_custom_call.1} parent=47 // pred_region
          %281 = dma.done [#allocation4], 16
        $region52: #{tpu_custom_call.1} parent=47 // pred_fallthru
          _
        // Predicated region
        $region53: #{tpu_custom_call.1} parent=47 // pred_check
          %p282 = pneg %p107
        $region54: #{tpu_custom_call.1} parent=47 // pred_check_branch
          %284 = sbr.rel (%p282) target = $region56
        $region55: #{tpu_custom_call.1} parent=47 // pred_region
          %286 = dma.done [#allocation7], 1536
        $region56: #{tpu_custom_call.1} parent=47 // pred_fallthru
          _
        // Predicated region
        $region57: #{tpu_custom_call.1} parent=47 // pred_check
          %p287 = pneg %p128
        $region58: #{tpu_custom_call.1} parent=47 // pred_check_branch
          %289 = sbr.rel (%p287) target = $region60
        $region59: #{tpu_custom_call.1} parent=47 // pred_region
          %291 = dma.done [#allocation7], 16
        $region60: #{tpu_custom_call.1} parent=47 // pred_fallthru
          _
        %p292 = scmp.lt.s32.totalorder %s23, 7
        %s293 = scalar_select %p292, %s23, 7
        %s294 = smul.addr %s293, 2
        %s295 = smul.addr %s294, 8
        %s296 = scalar_lea.vmem %s0, %s295
        %p297 = pneg %p44
        %p298 = pneg %p41
        %p299 = pneg %p65
        %p300 = pneg %p62
        %p301 = pneg %p86
        %p302 = pneg %p83
        %p303 = pneg %p107
        %p304 = pneg %p104
        %p305 = pneg %p128
        %p306 = pneg %p125
        %p307 = pneg %p149
        %p308 = pneg %p146
        %p309 = pneg %p170
        %p310 = pneg %p167
        %p311 = pneg %p196
        %p312 = pneg %p193
        %s313 = sand.u32 %s183, 1
        %s314 = scalar_lea.sflag [#allocation5], %s313
        %s315 = sand.u32 %s183, 1
        %s316 = smul.addr %s315, 16
        %s317 = scalar_lea.vmem [#allocation9], %s316
        %p318 = scmp.lt.s32.totalorder %s23, 7
        %s319 = scalar_select %p318, %s23, 7
        %s320 = smul.addr %s319, 2
        %s321 = smul.addr %s320, 8
        %s322 = scalar_lea.vmem %s0, %s321
        %v324 = vld [vmem:[%s322] sm:$0xff]
        %v325 = vld [vmem:[%s322 + $0x8] sm:$0xff]
        %v326 = vpack.c.bf16 %v324, %v324
        %v327 = vpack.c.bf16 %v325, %v325
        %v328 = vld [vmem:[%s1] sm:$0xf]
        %v329 = vld [vmem:[%s1 + $0x4] sm:$0xf]
        %v330 = vld [vmem:[%s1 + $0x8] sm:$0xf]
        %v331 = vld [vmem:[%s1 + $0xc] sm:$0xf]
        %v332 = vld [vmem:[%s1 + $0x10] sm:$0xf]
        %v333 = vld [vmem:[%s1 + $0x14] sm:$0xf]
        %v334 = vld [vmem:[%s1 + $0x18] sm:$0xf]
        %v335 = vld [vmem:[%s1 + $0x1c] sm:$0xf]
        %v336 = vld [vmem:[%s1 + $0x20] sm:$0xf]
        %v337 = vld [vmem:[%s1 + $0x24] sm:$0xf]
        %v338 = vld [vmem:[%s1 + $0x28] sm:$0xf]
        %v339 = vld [vmem:[%s1 + $0x2c] sm:$0xf]
        %v340 = vld [vmem:[%s1 + $0x30] sm:$0xf]
        %v341 = vld [vmem:[%s1 + $0x34] sm:$0xf]
        %v342 = vld [vmem:[%s1 + $0x38] sm:$0xf]
        %v343 = vld [vmem:[%s1 + $0x3c] sm:$0xf]
        %v344 = vld [vmem:[%s1 + $0x40] sm:$0xf]
        %v345 = vld [vmem:[%s1 + $0x44] sm:$0xf]
        %v346 = vld [vmem:[%s1 + $0x48] sm:$0xf]
        %v347 = vld [vmem:[%s1 + $0x4c] sm:$0xf]
        %v348 = vld [vmem:[%s1 + $0x50] sm:$0xf]
        %v349 = vld [vmem:[%s1 + $0x54] sm:$0xf]
        %v350 = vld [vmem:[%s1 + $0x58] sm:$0xf]
        %v351 = vld [vmem:[%s1 + $0x5c] sm:$0xf]
        %v352 = vld [vmem:[%s1 + $0x60] sm:$0xf]
        %v353 = vld [vmem:[%s1 + $0x64] sm:$0xf]
        %v354 = vld [vmem:[%s1 + $0x68] sm:$0xf]
        %v355 = vld [vmem:[%s1 + $0x6c] sm:$0xf]
        %v356 = vld [vmem:[%s1 + $0x70] sm:$0xf]
        %v357 = vld [vmem:[%s1 + $0x74] sm:$0xf]
        %v358 = vld [vmem:[%s1 + $0x78] sm:$0xf]
        %v359 = vld [vmem:[%s1 + $0x7c] sm:$0xf]
        %v360 = vld [vmem:[#allocation3] sm:$0x1]
        %v362 = vperm.slane %v360, 0
        %v396 = vunpack.c.l.b16 %v328
        %v397 = vunpack.c.l.b16 %v329
        %v398 = vunpack.c.l.b16 %v330
        %v399 = vunpack.c.l.b16 %v331
        %v400 = vunpack.c.l.b16 %v332
        %v401 = vunpack.c.l.b16 %v333
        %v402 = vunpack.c.l.b16 %v334
        %v403 = vunpack.c.l.b16 %v335
        %v404 = vunpack.c.l.b16 %v336
        %v405 = vunpack.c.l.b16 %v337
        %v406 = vunpack.c.l.b16 %v338
        %v407 = vunpack.c.l.b16 %v339
        %v408 = vunpack.c.l.b16 %v340
        %v409 = vunpack.c.l.b16 %v341
        %v410 = vunpack.c.l.b16 %v342
        %v411 = vunpack.c.l.b16 %v343
        %v412 = vunpack.c.l.b16 %v344
        %v413 = vunpack.c.l.b16 %v345
        %v414 = vunpack.c.l.b16 %v346
        %v415 = vunpack.c.l.b16 %v347
        %v416 = vunpack.c.l.b16 %v348
        %v417 = vunpack.c.l.b16 %v349
        %v418 = vunpack.c.l.b16 %v350
        %v419 = vunpack.c.l.b16 %v351
        %v420 = vunpack.c.l.b16 %v352
        %v421 = vunpack.c.l.b16 %v353
        %v422 = vunpack.c.l.b16 %v354
        %v423 = vunpack.c.l.b16 %v355
        %v424 = vunpack.c.l.b16 %v356
        %v425 = vunpack.c.l.b16 %v357
        %v426 = vunpack.c.l.b16 %v358
        %v427 = vunpack.c.l.b16 %v359
        %v428 = vpack.c.b16 %v397, %v396
        %v429 = vpack.c.b16 %v399, %v398
        %v430 = vpack.c.b16 %v401, %v400
        %v431 = vpack.c.b16 %v403, %v402
        %v432 = vpack.c.b16 %v405, %v404
        %v433 = vpack.c.b16 %v407, %v406
        %v434 = vpack.c.b16 %v409, %v408
        %v435 = vpack.c.b16 %v411, %v410
        %v436 = vpack.c.b16 %v413, %v412
        %v437 = vpack.c.b16 %v415, %v414
        %v438 = vpack.c.b16 %v417, %v416
        %v439 = vpack.c.b16 %v419, %v418
        %v440 = vpack.c.b16 %v421, %v420
        %v441 = vpack.c.b16 %v423, %v422
        %v442 = vpack.c.b16 %v425, %v424
        %v443 = vpack.c.b16 %v427, %v426
        %460 = vmatpush.bf16.msra.mxu0 %v435
        %461 = vmatpush.bf16.msra.mxu0 %v434
        %462 = vmatpush.bf16.msra.mxu0 %v433
        %463 = vmatpush.bf16.msra.mxu0 %v432
        %464 = vmatpush.bf16.msra.mxu0 %v431
        %465 = vmatpush.bf16.msra.mxu0 %v430
        %466 = vmatpush.bf16.msra.mxu0 %v429
        %467 = vmatpush.bf16.msra.mxu0 %v428
        %468 = vmatmul.bf16.gmra.mxu0 %v326
        %v469 = vpop.f32.mrf.mxu0
        %v470 = vadd.f32 %v362, %v469
        %v471 = vpop.f32.mrf.mxu0
        %472 = vdwg.mxu0
        %473 = vmatpush.bf16.msra.mxu0 %v443
        %474 = vmatpush.bf16.msra.mxu0 %v442
        %475 = vmatpush.bf16.msra.mxu0 %v441
        %476 = vmatpush.bf16.msra.mxu0 %v440
        %477 = vmatpush.bf16.msra.mxu0 %v439
        %478 = vmatpush.bf16.msra.mxu0 %v438
        %479 = vmatpush.bf16.msra.mxu0 %v437
        %480 = vmatpush.bf16.msra.mxu0 %v436
        %481 = vmatmul.bf16.gmra.mxu0 %v327
        %v482 = vpop.f32.mrf.mxu0
        %v483 = vadd.f32 %v470, %v482
        %v484 = vpop.f32.mrf.mxu0
        %485 = vdwg.mxu0
        %v486 = vmax.f32 %v483, 0.0
        %vm487 = vcmask 516096
        %vm488 = vsmask.f32 256
        %vm489 = vmand %vm487, %vm488
        %v490 = vld [vmem:[#allocation2] sm:$0x1]
        %v491 = vsel %vm489, 0, %v490
        %492 = vst [vmem:[#allocation2] sm:$0x1] %v491
        %vm493 = vsmask.f32 7938
        %vm494 = vmand %vm487, %vm493
        %v495 = vld [vmem:[#allocation2 + $0x4] sm:$0x1]
        %v496 = vsel %vm494, 0, %v495
        %497 = vst [vmem:[#allocation2 + $0x4] sm:$0x1] %v496
        %v498 = vpack.c.bf16 %v486, %v486
        %v500 = vshrl.u32 %v498, 16
        %v502 = vrot.slane %v500, 7
        %v503 = vshll.u32 %v498, 16
        %v505 = vor.u32 %v502, %v503
        %v506 = vrot.slane %v502, 4
        %vm509 = vcmask 519168
        %vm510 = vmand %vm509, %vm493
        %v511 = vld [vmem:[#allocation2] sm:$0xf]
        %v512 = vsel %vm510, %v505, %v511
        %513 = vst [vmem:[#allocation2] sm:$0xf] %v512
        %v514 = vld [vmem:[#allocation2 + $0x4] sm:$0x1]
        %v515 = vsel %vm489, %v506, %v514
        %516 = vst [vmem:[#allocation2 + $0x4] sm:$0x1] %v515
        %v517 = vld [vmem:[#allocation2] sm:$0xf]
        %v518 = vld [vmem:[#allocation6] sm:$0xf]
        %v519 = vld [vmem:[#allocation6 + $0x4] sm:$0xf]
        %v520 = vld [vmem:[#allocation6 + $0x8] sm:$0xf]
        %v521 = vld [vmem:[#allocation6 + $0xc] sm:$0xf]
        %v522 = vld [vmem:[#allocation6 + $0x10] sm:$0xf]
        %v523 = vld [vmem:[#allocation6 + $0x14] sm:$0xf]
        %v524 = vld [vmem:[#allocation6 + $0x18] sm:$0xf]
        %v525 = vld [vmem:[#allocation6 + $0x1c] sm:$0xf]
        %v526 = vld [vmem:[#allocation2 + $0x4] sm:$0x1]
        %s527 = scalar_lea.vmem [#allocation6], 32
        %v528 = vld [vmem:[%s527] sm:$0xf]
        %v529 = vld [vmem:[%s527 + $0x4] sm:$0xf]
        %v530 = vld [vmem:[%s527 + $0x8] sm:$0xf]
        %v531 = vld [vmem:[%s527 + $0xc] sm:$0xf]
        %v532 = vld [vmem:[%s527 + $0x10] sm:$0xf]
        %v533 = vld [vmem:[%s527 + $0x14] sm:$0xf]
        %v534 = vld [vmem:[%s527 + $0x18] sm:$0xf]
        %v535 = vld [vmem:[%s527 + $0x1c] sm:$0xf]
        %v538 = vunpack.c.l.b16 %v517
        %v539 = vunpack.c.l.b16 %v526
        %v540 = vpack.c.b16 %v539, %v538
        %v542 = vshrl.u32 %v540, 16
        %v544 = vshll.u32 %v540, 16
        %v546 = vrot.slane %v544, 1
        %v547 = vor.u32 %v542, %v546
        %v556 = vunpack.c.l.b16 %v528
        %v557 = vunpack.c.l.b16 %v529
        %v558 = vunpack.c.l.b16 %v530
        %v559 = vunpack.c.l.b16 %v531
        %v560 = vunpack.c.l.b16 %v532
        %v561 = vunpack.c.l.b16 %v533
        %v562 = vunpack.c.l.b16 %v534
        %v563 = vunpack.c.l.b16 %v535
        %v564 = vpack.c.b16 %v557, %v556
        %v565 = vpack.c.b16 %v559, %v558
        %v566 = vpack.c.b16 %v561, %v560
        %v567 = vpack.c.b16 %v563, %v562
        %vm572 = vcmask 523264
        %v574 = vsel %vm572, %v547, 0
        %576 = vmatpush.bf16.msra.mxu0 0
        %577 = vmatpush.bf16.msra.mxu0 0
        %578 = vmatpush.bf16.msra.mxu0 0
        %579 = vmatpush.bf16.msra.mxu0 0
        %580 = vmatpush.bf16.msra.mxu0 %v567
        %581 = vmatpush.bf16.msra.mxu0 %v566
        %582 = vmatpush.bf16.msra.mxu0 %v565
        %583 = vmatpush.bf16.msra.mxu0 %v564
        %584 = vmatmul.bf16.gmra.mxu0 %v574
        %v585 = vpop.f32.mrf.mxu0
        %v586 = vadd.f32 0.0, %v585
        %v587 = vpop.f32.mrf.mxu0
        %588 = vdwg.mxu0
        %v597 = vunpack.c.l.b16 %v518
        %v598 = vunpack.c.l.b16 %v519
        %v599 = vunpack.c.l.b16 %v520
        %v600 = vunpack.c.l.b16 %v521
        %v601 = vunpack.c.l.b16 %v522
        %v602 = vunpack.c.l.b16 %v523
        %v603 = vunpack.c.l.b16 %v524
        %v604 = vunpack.c.l.b16 %v525
        %v605 = vpack.c.b16 %v598, %v597
        %v606 = vpack.c.b16 %v600, %v599
        %v607 = vpack.c.b16 %v602, %v601
        %v608 = vpack.c.b16 %v604, %v603
        %v614 = vsel %vm572, %v517, 0
        %616 = vmatpush.bf16.msra.mxu0 0
        %617 = vmatpush.bf16.msra.mxu0 0
        %618 = vmatpush.bf16.msra.mxu0 0
        %619 = vmatpush.bf16.msra.mxu0 0
        %620 = vmatpush.bf16.msra.mxu0 %v608
        %621 = vmatpush.bf16.msra.mxu0 %v607
        %622 = vmatpush.bf16.msra.mxu0 %v606
        %623 = vmatpush.bf16.msra.mxu0 %v605
        %624 = vmatmul.bf16.gmra.mxu0 %v614
        %v625 = vpop.f32.mrf.mxu0
        %v626 = vadd.f32 %v586, %v625
        %v627 = vpop.f32.mrf.mxu0
        %628 = vdwg.mxu0
        %v629 = vld [vmem:[#allocation2] sm:$0xe]
        %s630 = scalar_lea.vmem [#allocation6], 64
        %v631 = vld [vmem:[%s630] sm:$0xf]
        %v632 = vld [vmem:[%s630 + $0x4] sm:$0xf]
        %v633 = vld [vmem:[%s630 + $0x8] sm:$0xf]
        %v634 = vld [vmem:[%s630 + $0xc] sm:$0xf]
        %v635 = vld [vmem:[%s630 + $0x10] sm:$0xf]
        %v636 = vld [vmem:[%s630 + $0x14] sm:$0xf]
        %v637 = vld [vmem:[%s630 + $0x18] sm:$0xf]
        %v638 = vld [vmem:[%s630 + $0x1c] sm:$0xf]
        %v640 = vunpack.c.l.b16 %v629
        %v641 = vpack.c.b16 %v539, %v640
        %v642 = vrot.slane %v641, 1
        %v651 = vunpack.c.l.b16 %v631
        %v652 = vunpack.c.l.b16 %v632
        %v653 = vunpack.c.l.b16 %v633
        %v654 = vunpack.c.l.b16 %v634
        %v655 = vunpack.c.l.b16 %v635
        %v656 = vunpack.c.l.b16 %v636
        %v657 = vunpack.c.l.b16 %v637
        %v658 = vunpack.c.l.b16 %v638
        %v659 = vpack.c.b16 %v652, %v651
        %v660 = vpack.c.b16 %v654, %v653
        %v661 = vpack.c.b16 %v656, %v655
        %v662 = vpack.c.b16 %v658, %v657
        %v668 = vsel %vm572, %v642, 0
        %670 = vmatpush.bf16.msra.mxu0 0
        %671 = vmatpush.bf16.msra.mxu0 0
        %672 = vmatpush.bf16.msra.mxu0 0
        %673 = vmatpush.bf16.msra.mxu0 0
        %674 = vmatpush.bf16.msra.mxu0 %v662
        %675 = vmatpush.bf16.msra.mxu0 %v661
        %676 = vmatpush.bf16.msra.mxu0 %v660
        %677 = vmatpush.bf16.msra.mxu0 %v659
        %678 = vmatmul.bf16.gmra.mxu0 %v668
        %v679 = vpop.f32.mrf.mxu0
        %v680 = vadd.f32 0.0, %v679
        %v681 = vpop.f32.mrf.mxu0
        %682 = vdwg.mxu0
        %v683 = vadd.f32 %v626, %v680
        %v684 = vld [vmem:[#allocation8] sm:$0x1]
        %v686 = vperm.slane %v684, 0
        %v688 = vadd.f32 %v683, %v686
        %v689 = vmax.f32 %v688, 0.0
        %v690 = vpack.c.bf16 %v689, %v689
        %v691 = vld [vmem:[%s5] sm:$0xff]
        %v692 = vld [vmem:[%s5 + $0x8] sm:$0xff]
        %v693 = vld [vmem:[%s5 + $0x10] sm:$0xff]
        %v694 = vld [vmem:[%s5 + $0x18] sm:$0xff]
        %v695 = vld [vmem:[%s5 + $0x20] sm:$0xff]
        %v696 = vld [vmem:[%s5 + $0x28] sm:$0xff]
        %v697 = vld [vmem:[%s5 + $0x30] sm:$0xff]
        %v698 = vld [vmem:[%s5 + $0x38] sm:$0xff]
        %v699 = vld [vmem:[%s6] sm:$0x3]
        %v701 = vperm.slane %v699, 0
        %v702 = vperm.slane %v699, 1
        %v713 = vunpack.c.l.b16 %v691
        %v714 = vunpack.c.h.b16 %v691
        %v715 = vunpack.c.l.b16 %v692
        %v716 = vunpack.c.h.b16 %v692
        %v717 = vunpack.c.l.b16 %v693
        %v718 = vunpack.c.h.b16 %v693
        %v719 = vunpack.c.l.b16 %v694
        %v720 = vunpack.c.h.b16 %v694
        %v721 = vunpack.c.l.b16 %v695
        %v722 = vunpack.c.h.b16 %v695
        %v723 = vunpack.c.l.b16 %v696
        %v724 = vunpack.c.h.b16 %v696
        %v725 = vunpack.c.l.b16 %v697
        %v726 = vunpack.c.h.b16 %v697
        %v727 = vunpack.c.l.b16 %v698
        %v728 = vunpack.c.h.b16 %v698
        %v729 = vpack.c.b16 %v715, %v713
        %v730 = vpack.c.b16 %v716, %v714
        %v731 = vpack.c.b16 %v719, %v717
        %v732 = vpack.c.b16 %v720, %v718
        %v733 = vpack.c.b16 %v723, %v721
        %v734 = vpack.c.b16 %v724, %v722
        %v735 = vpack.c.b16 %v727, %v725
        %v736 = vpack.c.b16 %v728, %v726
        %v746 = vsel %vm572, %v690, 0
        %748 = vmatpush.bf16.msra.mxu0 0
        %749 = vmatpush.bf16.msra.mxu0 0
        %750 = vmatpush.bf16.msra.mxu0 0
        %751 = vmatpush.bf16.msra.mxu0 0
        %752 = vmatpush.bf16.msra.mxu0 %v735
        %753 = vmatpush.bf16.msra.mxu0 %v733
        %754 = vmatpush.bf16.msra.mxu0 %v731
        %755 = vmatpush.bf16.msra.mxu0 %v729
        %756 = vmatmul.bf16.gmra.mxu0 %v746
        %v757 = vpop.f32.mrf.mxu0
        %v758 = vadd.f32 %v701, %v757
        %v759 = vpop.f32.mrf.mxu0
        %760 = vdwg.mxu0
        %761 = vmatpush.bf16.msra.mxu0 0
        %762 = vmatpush.bf16.msra.mxu0 0
        %763 = vmatpush.bf16.msra.mxu0 0
        %764 = vmatpush.bf16.msra.mxu0 0
        %765 = vmatpush.bf16.msra.mxu0 %v736
        %766 = vmatpush.bf16.msra.mxu0 %v734
        %767 = vmatpush.bf16.msra.mxu0 %v732
        %768 = vmatpush.bf16.msra.mxu0 %v730
        %769 = vmatmul.bf16.gmra.mxu0 %v746
        %v770 = vpop.f32.mrf.mxu0
        %v771 = vadd.f32 %v702, %v770
        %v772 = vpop.f32.mrf.mxu0
        %773 = vdwg.mxu0
        %v774 = vadd.f32 %v758, %v324
        %v775 = vadd.f32 %v771, %v325
        %v776 = vmax.f32 %v774, 0.0
        %v777 = vmax.f32 %v775, 0.0
        %778 = vst [vmem:[%s317] sm:$0xff] %v776
        %779 = vst [vmem:[%s317 + $0x8] sm:$0xff] %v777
        %s780 = sand.u32 %s183, 1
        %s781 = scalar_lea.sflag [#allocation5], %s780
        %s782 = sand.u32 %s183, 1
        %s783 = smul.addr %s782, 16
        %s784 = scalar_lea.vmem [#allocation9], %s783
        // Predicated region
        $region61: #{tpu_custom_call.1} parent=47 // pred_check
          %p785 = pneg %p193
        $region62: #{tpu_custom_call.1} parent=47 // pred_check_branch
          %787 = sbr.rel (%p785) target = $region64
        $region63: #{tpu_custom_call.1} parent=47 // pred_region
          %789 = vsyncadd %s781, 0
          %s790 = smul.addr %s23, 2
          %s791 = smul.addr %s790, 8
          %s792 = scalar_lea.hbm %s7, %s791
          %s794 = sshll.u32 %s784, 4
          %s795 = int_to_ptr.vmem [resolvable:$true] %s794
          %s796 = sshll.u32 %s792, 4
          %s797 = int_to_ptr.hbm [resolvable:$true] %s796
          %799 = dma.vmem_to_hbm [thread:$0]  %s795, 256, %s797, %s781
        $region64: #{tpu_custom_call.1} parent=47 // pred_fallthru
          _
      $region48: #{tpu_custom_call.1} parent=5 // pred_fallthru
        _
      %p800 = scmp.le.s32.totalorder 2, %s18
      // Predicated region
      $region65: #{tpu_custom_call.1} parent=5 // pred_check
        %p801 = pneg %p800
      $region66: #{tpu_custom_call.1} parent=5 // pred_check_branch
        %803 = sbr.rel (%p801) target = $region68
      $region67: #{tpu_custom_call.1} parent=5 // pred_region
        %s804 = ssub.s32 %s18, 2
        // Predicated region
        $region69: #{tpu_custom_call.1} parent=67 // pred_check
          %p805 = pneg %p199
        $region70: #{tpu_custom_call.1} parent=67 // pred_check_branch
          %807 = sbr.rel (%p805) target = $region72
        $region71: #{tpu_custom_call.1} parent=67 // pred_region
          %s808 = sand.u32 %s184, 1
          %s809 = scalar_lea.sflag [#allocation5], %s808
          %s810 = sand.u32 %s184, 1
          %s811 = smul.addr %s810, 16
          %s812 = scalar_lea.vmem [#allocation9], %s811
          %814 = dma.done %s809, 256
        $region72: #{tpu_custom_call.1} parent=67 // pred_fallthru
          _
      $region68: #{tpu_custom_call.1} parent=5 // pred_fallthru
        _
    $region6: #{tpu_custom_call.1} parent=1 // loop_footer
      %s22 = sadd.s32 1, %s18
    $region7: #{tpu_custom_call.1} parent=1 // loop_footer_branch
      %17 = sbr.rel target = $region3
    $region8: #{tpu_custom_call.1} parent=1 // loop_exit
      _
    %815 = vsyncpa [#allocation4], 1
    %s816 = scalar_lea.sflag [#allocation4], 1
    %817 = vsyncpa %s816, 1
    %818 = vsyncpa [#allocation7], 1
    %819 = vsyncpa [#allocation5], 1
    %s820 = scalar_lea.sflag [#allocation5], 1
    %821 = vsyncpa %s820, 1

</llo_original>
